<compile_context>
chip_gen: v7x
topology: tpu7x:2x2x1
jax: 0.10.0
libtpu: 0.0.40
codegen_flags: <defaults>
</compile_context>

<pallas_src>
import functools
import math

import jax
import jax.numpy as jnp
from jax.experimental import pallas as pl
from jax.experimental.pallas import tpu as pltpu


# ----------------------------- chip geometry ---------------------------------

def _tpu_geometry():
    """Returns (vmem_capacity_bytes, num_tensorcores) with safe fallbacks."""
    vmem = 128 << 20
    num_tc = 1
    try:
        info = pltpu.get_tpu_info()
        vmem = int(getattr(info, "vmem_capacity_bytes", vmem))
    except Exception:
        pass
    try:
        kind = jax.devices()[0].device_kind.lower().replace(" ", "")
    except Exception:
        kind = ""
    if "v7" in kind or "tpu7" in kind:
        num_tc = 2                      # v7x megacore: 2 TensorCores / chip
        vmem = min(vmem, 64 << 20)      # 64 MiB VMEM per TC on v7x
    return vmem, num_tc


def _params_bytes(params):
    return sum(int(v.size) * jnp.dtype(v.dtype).itemsize for v in params.values())


# ----------------------------- fused kernel ----------------------------------

def _fused_cbam_kernel(x_ref, w1_ref, b1_ref, w2_ref, b2_ref, o_ref):
    # x_ref: (tb, C, T), T lane-dense.  Reductions + gate math in f32.
    x32 = x_ref[...].astype(jnp.float32)
    inv_t = 1.0 / x_ref.shape[2]
    mean_sq = jnp.sum(x32, axis=2) * inv_t                    # (tb, C)
    max_sq = jnp.max(x32, axis=2)                             # (tb, C)

    w1 = w1_ref[...]
    b1 = b1_ref[...]
    h = (jnp.maximum(jnp.dot(mean_sq, w1, preferred_element_type=jnp.float32) + b1, 0.0)
         + jnp.maximum(jnp.dot(max_sq, w1, preferred_element_type=jnp.float32) + b1, 0.0))
    g = jax.nn.sigmoid(
        jnp.dot(h, w2_ref[...], preferred_element_type=jnp.float32) + b2_ref[...])

    # Re-read x at the point of use: keeps the gated store a streaming VMEM
    # read instead of a tile-sized live range held across the gate math.
    o_ref[...] = (x_ref[...].astype(jnp.float32) * g[:, :, None]).astype(o_ref.dtype)


def _pick_batch_tile(B, C, T, in_bytes, out_bytes, num_tc, budget_bytes):
    row_in = C * T * in_bytes                       # input bytes per batch row
    row_db = 2 * C * T * (in_bytes + out_bytes)     # double-buffered in+out / row
    tb = min(B, max(1, budget_bytes // row_db))     # fit the VMEM budget
    tb = min(tb, max(1, (4 << 20) // row_in))       # >4 MiB blocks: diminishing returns
    if num_tc > 1 and B > num_tc:
        # v7x megacore: aim for ~3 pipelined grid steps per core so DMA
        # prologue/epilogue is hidden, but never shrink blocks below ~1 MiB.
        rows_1mib = ((1 << 20) + row_in - 1) // row_in
        per_core_cap = max(1, B // (3 * num_tc))
        tb = min(tb, max(per_core_cap, min(rows_1mib, tb)))
    return max(1, min(tb, B))


def _fused_apply(x, params, out_dtype, vmem_total, num_tc, batch_block_override):
    B, C, T = x.shape
    Cr = params["w1"].shape[1]
    in_b = jnp.dtype(x.dtype).itemsize
    out_b = jnp.dtype(out_dtype).itemsize
    w_bytes = _params_bytes(params)

    budget = max((vmem_total * 3) // 4 - w_bytes - (2 << 20), 1 << 20)
    tb = _pick_batch_tile(B, C, T, in_b, out_b, num_tc, budget)
    if batch_block_override is not None:
        tb = max(1, min(int(batch_block_override), B))

    footprint = 2 * tb * C * T * (in_b + out_b) + 2 * w_bytes + (2 << 20)
    vmem_limit = int(min(max(footprint, 32 << 20), vmem_total - (8 << 20)))

    row = lambda i: (i, 0, 0)
    rep2 = lambda i: (0, 0)
    return pl.pallas_call(
        _fused_cbam_kernel,
        out_shape=jax.ShapeDtypeStruct((B, C, T), out_dtype),
        grid=(pl.cdiv(B, tb),),                     # ragged B: OOB writes dropped
        in_specs=[
            pl.BlockSpec((tb, C, T), row),          # x tile (lane-dense T)
            pl.BlockSpec((C, Cr), rep2),            # fc1 weight (in, out)
            pl.BlockSpec((1, Cr), rep2),            # fc1 bias
            pl.BlockSpec((Cr, C), rep2),            # fc2 weight (in, out)
            pl.BlockSpec((1, C), rep2),             # fc2 bias
        ],
        out_specs=pl.BlockSpec((tb, C, T), row),
        compiler_params=pltpu.CompilerParams(
            dimension_semantics=("parallel",),
            vmem_limit_bytes=vmem_limit),
    )(x, params["w1"], params["b1"], params["w2"], params["b2"])


# ------------------------ two-pass fallback (T-tiled) -------------------------

def _gate_kernel(x_ref, w1_ref, b1_ref, w2_ref, b2_ref, g_ref, sum_sc, max_sc,
                 *, true_t, tile_t, needs_mask):
    t_idx = pl.program_id(1)

    @pl.when(t_idx == 0)
    def _init():
        sum_sc[...] = jnp.zeros_like(sum_sc)
        max_sc[...] = jnp.full_like(max_sc, -jnp.inf)

    x = x_ref[...].astype(jnp.float32)              # (tb, C, tile_t)
    if needs_mask:
        lane = jax.lax.broadcasted_iota(jnp.int32, x.shape, 2) + t_idx * tile_t
        valid = lane < true_t
        sum_part = jnp.sum(jnp.where(valid, x, 0.0), axis=2)
        max_part = jnp.max(jnp.where(valid, x, -jnp.inf), axis=2)
    else:
        sum_part = jnp.sum(x, axis=2)
        max_part = jnp.max(x, axis=2)
    sum_sc[...] += sum_part
    max_sc[...] = jnp.maximum(max_sc[...], max_part)

    @pl.when(t_idx == pl.num_programs(1) - 1)
    def _finalize():
        mean_sq = sum_sc[...] * (1.0 / true_t)
        w1 = w1_ref[...]
        b1 = b1_ref[...]
        h = (jnp.maximum(jnp.dot(mean_sq, w1, preferred_element_type=jnp.float32) + b1, 0.0)
             + jnp.maximum(jnp.dot(max_sc[...], w1,
                                   preferred_element_type=jnp.float32) + b1, 0.0))
        g = jax.nn.sigmoid(
            jnp.dot(h, w2_ref[...], preferred_element_type=jnp.float32) + b2_ref[...])
        g_ref[...] = g[:, :, None]


def _scale_kernel(g_ref, x_ref, o_ref):
    o_ref[...] = (x_ref[...].astype(jnp.float32) * g_ref[...]).astype(o_ref.dtype)


def _two_pass_apply(x, params, out_dtype, vmem_total, num_tc,
                    batch_block_override, tile_t_override):
    B, C, T = x.shape
    Cr = params["w1"].shape[1]
    in_b = jnp.dtype(x.dtype).itemsize
    out_b = jnp.dtype(out_dtype).itemsize
    w_bytes = _params_bytes(params)

    budget = max((vmem_total * 3) // 4 - w_bytes - (4 << 20), 4 << 20)

    tb = min(B, 8)
    if batch_block_override is not None:
        tb = max(1, min(int(batch_block_override), B))

    # Per-lane cost of the fatter (scale) pass: double-buffered x in + out.
    lane_cost = 2 * tb * C * (in_b + out_b)
    max_lanes = max(128, budget // max(1, lane_cost))
    tile_t = T if max_lanes >= T else max(128, (max_lanes // 128) * 128)
    if tile_t_override is not None:
        tile_t = int(tile_t_override)
    # TODO(synk): if even a (1, C, 128) slab exceeds VMEM, a channel-tiled
    # variant would be needed; not implemented.

    needs_mask = (T % tile_t) != 0
    n_b = pl.cdiv(B, tb)
    n_t = pl.cdiv(T, tile_t)

    footprint = 2 * tb * C * tile_t * (in_b + out_b) + 2 * w_bytes + (4 << 20)
    vmem_limit = int(min(max(footprint, 32 << 20), vmem_total - (8 << 20)))

    x_spec = pl.BlockSpec((tb, C, tile_t), lambda b, t: (b, 0, t))
    g_spec = pl.BlockSpec((tb, C, 1), lambda b, t: (b, 0, 0))
    rep2 = lambda b, t: (0, 0)

    # Pass 1: streaming sum/max over T tiles; gate computed on the last tile.
    gate = pl.pallas_call(
        functools.partial(_gate_kernel, true_t=T, tile_t=tile_t,
                          needs_mask=needs_mask),
        out_shape=jax.ShapeDtypeStruct((B, C, 1), jnp.float32),
        grid=(n_b, n_t),
        in_specs=[
            x_spec,
            pl.BlockSpec((C, Cr), rep2),
            pl.BlockSpec((1, Cr), rep2),
            pl.BlockSpec((Cr, C), rep2),
            pl.BlockSpec((1, C), rep2),
        ],
        out_specs=g_spec,
        scratch_shapes=[pltpu.VMEM((tb, C), jnp.float32),
                        pltpu.VMEM((tb, C), jnp.float32)],
        compiler_params=pltpu.CompilerParams(
            dimension_semantics=("parallel", "arbitrary"),
            vmem_limit_bytes=vmem_limit),
    )(x, params["w1"], params["b1"], params["w2"], params["b2"])

    # Pass 2: o = x * g, tile by tile (all blocks independent).
    return pl.pallas_call(
        _scale_kernel,
        out_shape=jax.ShapeDtypeStruct((B, C, T), out_dtype),
        grid=(n_b, n_t),
        in_specs=[g_spec, x_spec],
        out_specs=pl.BlockSpec((tb, C, tile_t), lambda b, t: (b, 0, t)),
        compiler_params=pltpu.CompilerParams(
            dimension_semantics=("parallel", "parallel"),
            vmem_limit_bytes=vmem_limit),
    )(gate, x)


# ----------------------------- public wrapper ---------------------------------

def channel_cbam_apply(x, params, *, out_dtype=None, force_two_pass=False,
                       batch_block_override=None, tile_t_override=None):
    B, C, T = x.shape
    out_dtype = jnp.dtype(out_dtype if out_dtype is not None else x.dtype)
    vmem_total, num_tc = _tpu_geometry()
    in_b = jnp.dtype(x.dtype).itemsize
    out_b = out_dtype.itemsize
    w_bytes = _params_bytes(params)

    # Can a single (1, C, T) slab (double-buffered in + out) fit comfortably?
    single_row = 2 * C * T * (in_b + out_b)
    fits_fused = single_row + w_bytes + (4 << 20) <= (vmem_total * 3) // 4

    if force_two_pass or not fits_fused:
        return _two_pass_apply(x, params, out_dtype, vmem_total, num_tc,
                               batch_block_override, tile_t_override)
    return _fused_apply(x, params, out_dtype, vmem_total, num_tc,
                        batch_block_override)


# ----------------------------- parameters -------------------------------------

def init_params(key, num_channels, reduction_ratio=2):
    """Matches torch.nn.Linear default init; weights stored pre-transposed to
    (in_features, out_features) for lane-dense matmuls."""
    cr = num_channels // reduction_ratio
    k1, k2, k3, k4 = jax.random.split(key, 4)
    bound1 = 1.0 / math.sqrt(num_channels)
    w1 = jax.random.uniform(k1, (cr, num_channels), jnp.float32, -bound1, bound1)
    b1 = jax.random.uniform(k2, (cr,), jnp.float32, -bound1, bound1)
    bound2 = 1.0 / math.sqrt(cr)
    w2 = jax.random.uniform(k3, (num_channels, cr), jnp.float32, -bound2, bound2)
    b2 = jax.random.uniform(k4, (num_channels,), jnp.float32, -bound2, bound2)
    return dict(
        w1=w1.T, b1=b1.reshape(1, cr),
        w2=w2.T, b2=b2.reshape(1, num_channels),
    )


# ----------------------------- pure-JAX reference ------------------------------

def _ref_channel_cbam(x, p):
    mean_sq = jnp.mean(x, axis=2)
    max_sq = jnp.max(x, axis=2)
    h = (jnp.maximum(mean_sq @ p["w1"] + p["b1"], 0.0)
         + jnp.maximum(max_sq @ p["w1"] + p["b1"], 0.0))
    g = jax.nn.sigmoid(h @ p["w2"] + p["b2"])
    return x * g[:, :, None]


# ----------------------------- main --------------------------------------------

if __name__ == "__main__":
    # Shapes implied by the module forward: (batch, num_channels, T).
    B, C, T = 8, 32, 128
    reduction_ratio = 2

    key = jax.random.PRNGKey(0)
    kx, kp = jax.random.split(key)
    x = jax.random.normal(kx, (B, C, T), dtype=jnp.float32)
    params = init_params(kp, C, reduction_ratio)

    # 1) fused path, f32 I/O
    out = jax.block_until_ready(jax.jit(channel_cbam_apply)(x, params))
    assert out.shape == (B, C, T) and out.dtype == jnp.float32
    ref = _ref_channel_cbam(x, params)
    err = float(jnp.max(jnp.abs(out - ref)))
    assert err < 2e-5, f"f32 fused max abs err {err}"

    # 2) bf16 streaming I/O (halves HBM traffic); reductions/gate stay f32
    xb = x.astype(jnp.bfloat16)
    outb = jax.block_until_ready(jax.jit(channel_cbam_apply)(xb, params))
    assert outb.dtype == jnp.bfloat16
    refb = _ref_channel_cbam(xb.astype(jnp.float32), params)
    errb = float(jnp.max(jnp.abs(outb.astype(jnp.float32) - refb)))
    assert errb < 5e-2, f"bf16 fused max abs err {errb}"

    # 3) ragged batch (cdiv grid: padded last block, OOB writes dropped)
    B2 = 10
    x2 = jax.random.normal(jax.random.PRNGKey(1), (B2, C, T), dtype=jnp.float32)
    out2 = jax.block_until_ready(
        channel_cbam_apply(x2, params, batch_block_override=4))
    err2 = float(jnp.max(jnp.abs(out2 - _ref_channel_cbam(x2, params))))
    assert err2 < 2e-5, f"ragged-batch max abs err {err2}"

    # 4) forced two-pass T-tiled fallback; ragged T exercises lane masking
    B3, T3 = 4, 320
    x3 = jax.random.normal(jax.random.PRNGKey(2), (B3, C, T3), dtype=jnp.float32)
    out3 = jax.block_until_ready(
        channel_cbam_apply(x3, params, force_two_pass=True, tile_t_override=128))
    err3 = float(jnp.max(jnp.abs(out3 - _ref_channel_cbam(x3, params))))
    assert err3 < 2e-5, f"two-pass max abs err {err3}"

    print("KERNEL_OK")
</pallas_src>

<mosaic_0001>
module attributes {stable_mosaic.version = 11 : i64} {
  func.func @_fused_cbam_kernel(%arg0: i32, %arg1: memref<8x32x128xf32, #tpu.memory_space<vmem>>, %arg2: memref<32x16xf32, #tpu.memory_space<vmem>>, %arg3: memref<1x16xf32, #tpu.memory_space<vmem>>, %arg4: memref<16x32xf32, #tpu.memory_space<vmem>>, %arg5: memref<1x32xf32, #tpu.memory_space<vmem>>, %arg6: memref<8x32x128xf32, #tpu.memory_space<vmem>>) attributes {dimension_semantics = [#tpu.dimension_semantics<parallel>], iteration_bounds = array<i64: 1>, scalar_prefetch = 0 : i64, scratch_operands = 0 : i64, tpu.core_type = #tpu.core_type<tc>, window_params = [{transform_indices = @transform_0, window_bounds = array<i64: 8, 32, 128>}, {pipeline_mode = #tpu.pipeline_mode<synchronous>, transform_indices = @transform_1, window_bounds = array<i64: 32, 16>}, {pipeline_mode = #tpu.pipeline_mode<synchronous>, transform_indices = @transform_2, window_bounds = array<i64: 1, 16>}, {pipeline_mode = #tpu.pipeline_mode<synchronous>, transform_indices = @transform_3, window_bounds = array<i64: 16, 32>}, {pipeline_mode = #tpu.pipeline_mode<synchronous>, transform_indices = @transform_4, window_bounds = array<i64: 1, 32>}, {transform_indices = @transform_5, window_bounds = array<i64: 8, 32, 128>}]} {
    %c0 = arith.constant 0 : index
    %c0_0 = arith.constant 0 : index
    %c0_1 = arith.constant 0 : index
    %0 = vector.load %arg1[%c0, %c0_0, %c0_1] : memref<8x32x128xf32, #tpu.memory_space<vmem>>, vector<8x32x128xf32>
    %cst = arith.constant dense<0.000000e+00> : vector<8x32xf32>
    %1 = vector.multi_reduction <add>, %0, %cst [2] : vector<8x32x128xf32> to vector<8x32xf32>
    %cst_2 = arith.constant 7.812500e-03 : f32
    %2 = vector.broadcast %cst_2 : f32 to vector<8x32xf32>
    %3 = arith.mulf %1, %2 : vector<8x32xf32>
    %cst_3 = arith.constant dense<0xFF800000> : vector<8x32xf32>
    %4 = vector.multi_reduction <maximumf>, %0, %cst_3 [2] : vector<8x32x128xf32> to vector<8x32xf32>
    %c0_4 = arith.constant 0 : index
    %c0_5 = arith.constant 0 : index
    %5 = vector.load %arg2[%c0_4, %c0_5] : memref<32x16xf32, #tpu.memory_space<vmem>>, vector<32x16xf32>
    %c0_6 = arith.constant 0 : index
    %c0_7 = arith.constant 0 : index
    %6 = vector.load %arg3[%c0_6, %c0_7] : memref<1x16xf32, #tpu.memory_space<vmem>>, vector<1x16xf32>
    %cst_8 = arith.constant dense<0.000000e+00> : vector<8x16xf32>
    %7 = tpu.matmul %3, %5, %cst_8 {dimension_numbers = #tpu.dot_dimension_numbers<[1], [0], [0], [1], [0, 0, 1, 1], [], []>} : vector<8x32xf32>, vector<32x16xf32>, vector<8x16xf32> -> vector<8x16xf32>
    %8 = vector.broadcast %6 : vector<1x16xf32> to vector<8x16xf32>
    %9 = arith.addf %7, %8 : vector<8x16xf32>
    %cst_9 = arith.constant 0.000000e+00 : f32
    %10 = vector.broadcast %cst_9 : f32 to vector<8x16xf32>
    %11 = arith.maximumf %9, %10 : vector<8x16xf32>
    %cst_10 = arith.constant dense<0.000000e+00> : vector<8x16xf32>
    %12 = tpu.matmul %4, %5, %cst_10 {dimension_numbers = #tpu.dot_dimension_numbers<[1], [0], [0], [1], [0, 0, 1, 1], [], []>} : vector<8x32xf32>, vector<32x16xf32>, vector<8x16xf32> -> vector<8x16xf32>
    %13 = vector.broadcast %6 : vector<1x16xf32> to vector<8x16xf32>
    %14 = arith.addf %12, %13 : vector<8x16xf32>
    %cst_11 = arith.constant 0.000000e+00 : f32
    %15 = vector.broadcast %cst_11 : f32 to vector<8x16xf32>
    %16 = arith.maximumf %14, %15 : vector<8x16xf32>
    %17 = arith.addf %11, %16 : vector<8x16xf32>
    %c0_12 = arith.constant 0 : index
    %c0_13 = arith.constant 0 : index
    %18 = vector.load %arg4[%c0_12, %c0_13] : memref<16x32xf32, #tpu.memory_space<vmem>>, vector<16x32xf32>
    %cst_14 = arith.constant dense<0.000000e+00> : vector<8x32xf32>
    %19 = tpu.matmul %17, %18, %cst_14 {dimension_numbers = #tpu.dot_dimension_numbers<[1], [0], [0], [1], [0, 0, 1, 1], [], []>} : vector<8x16xf32>, vector<16x32xf32>, vector<8x32xf32> -> vector<8x32xf32>
    %c0_15 = arith.constant 0 : index
    %c0_16 = arith.constant 0 : index
    %20 = vector.load %arg5[%c0_15, %c0_16] : memref<1x32xf32, #tpu.memory_space<vmem>>, vector<1x32xf32>
    %21 = vector.broadcast %20 : vector<1x32xf32> to vector<8x32xf32>
    %22 = arith.addf %19, %21 : vector<8x32xf32>
    %23 = arith.negf %22 : vector<8x32xf32>
    %24 = math.exp %23 : vector<8x32xf32>
    %cst_17 = arith.constant 1.000000e+00 : f32
    %25 = vector.broadcast %cst_17 : f32 to vector<8x32xf32>
    %26 = arith.addf %25, %24 : vector<8x32xf32>
    %27 = arith.divf %25, %26 : vector<8x32xf32>
    %c0_18 = arith.constant 0 : index
    %c0_19 = arith.constant 0 : index
    %c0_20 = arith.constant 0 : index
    %28 = vector.load %arg1[%c0_18, %c0_19, %c0_20] : memref<8x32x128xf32, #tpu.memory_space<vmem>>, vector<8x32x128xf32>
    %29 = vector.shape_cast %27 : vector<8x32xf32> to vector<8x32x1xf32>
    %30 = vector.broadcast %29 : vector<8x32x1xf32> to vector<8x32x128xf32>
    %31 = arith.mulf %28, %30 : vector<8x32x128xf32>
    %c0_21 = arith.constant 0 : index
    %c0_22 = arith.constant 0 : index
    %c0_23 = arith.constant 0 : index
    %32 = vector.load %arg6[%c0_21, %c0_22, %c0_23] : memref<8x32x128xf32, #tpu.memory_space<vmem>>, vector<8x32x128xf32>
    tpu.vector_store %arg6[%c0_21, %c0_22, %c0_23], %31 {strides = array<i32>} : memref<8x32x128xf32, #tpu.memory_space<vmem>>, vector<8x32x128xf32>,
    return
  }
  func.func @transform_0(%arg0: i32) -> (i32, i32, i32) {
    %c0_i32 = arith.constant 0 : i32
    %c0_i32_0 = arith.constant 0 : i32
    %c0_i32_1 = arith.constant 0 : i32
    return %arg0, %c0_i32, %c0_i32_0 : i32, i32, i32
  }
  func.func @transform_1(%arg0: i32) -> (i32, i32) {
    %c0_i32 = arith.constant 0 : i32
    %c0_i32_0 = arith.constant 0 : i32
    %c0_i32_1 = arith.constant 0 : i32
    return %c0_i32, %c0_i32_0 : i32, i32
  }
  func.func @transform_2(%arg0: i32) -> (i32, i32) {
    %c0_i32 = arith.constant 0 : i32
    %c0_i32_0 = arith.constant 0 : i32
    %c0_i32_1 = arith.constant 0 : i32
    return %c0_i32, %c0_i32_0 : i32, i32
  }
  func.func @transform_3(%arg0: i32) -> (i32, i32) {
    %c0_i32 = arith.constant 0 : i32
    %c0_i32_0 = arith.constant 0 : i32
    %c0_i32_1 = arith.constant 0 : i32
    return %c0_i32, %c0_i32_0 : i32, i32
  }
  func.func @transform_4(%arg0: i32) -> (i32, i32) {
    %c0_i32 = arith.constant 0 : i32
    %c0_i32_0 = arith.constant 0 : i32
    %c0_i32_1 = arith.constant 0 : i32
    return %c0_i32, %c0_i32_0 : i32, i32
  }
  func.func @transform_5(%arg0: i32) -> (i32, i32, i32) {
    %c0_i32 = arith.constant 0 : i32
    %c0_i32_0 = arith.constant 0 : i32
    %c0_i32_1 = arith.constant 0 : i32
    return %arg0, %c0_i32, %c0_i32_0 : i32, i32, i32
  }
}

</mosaic_0001>

<llo_original>
// kernel: channel_cbam_apply.1
$region0: #{channel_cbam_apply.1}
  #allocation0 [shape = 'u32[]', space=smem, size = 0x4, offset = 0x4, fixed_abs, tag = 'smem constant byte address 0x4 - core index']
  #allocation1 [shape = 'u32[144,128]{1,0:T(1,128)}', space=vmem, size = 0x12000, scoped, tag = 'internal scratch']
  %s0 = inlined_call_operand.hbm [shape: f32[8,32,128], index: 0, kind: input, shape index: {}]
  %s1 = inlined_call_operand.vmem [shape: f32[32,16], index: 1, kind: input, shape index: {}]
  %s2 = inlined_call_operand.vmem [shape: f32[1,16], index: 2, kind: input, shape index: {}]
  %s3 = inlined_call_operand.vmem [shape: f32[16,32], index: 3, kind: input, shape index: {}]
  %s4 = inlined_call_operand.vmem [shape: f32[1,32], index: 4, kind: input, shape index: {}]
  %s5 = inlined_call_operand.hbm [shape: f32[8,32,128], index: 5, kind: output, shape index: {}]
  %s6 = sld [smem:[#allocation0]]
  $region34: #{channel_cbam_apply.1} parent=0
    _
  %s8 = ssub.s32 1, %s6
  %s9 = scalar_select 0, %s8, %s6
  $region1: #{channel_cbam_apply.1} parent=0
    #allocation2 [shape = 'u8[131072]{0}', space=vmem, size = 0x20000, scoped, tag = 'input window, operand 0, single buffered']
    #allocation3 [shape = 's32[1]{0}', space=sflag, size = 0x4, scoped, tag = 'scoped memory for channel_cbam_apply.1']
    #allocation4 [shape = 's32[1]{0}', space=sflag, size = 0x4, scoped, tag = 'scoped memory for channel_cbam_apply.1']
    #allocation5 [shape = 'u8[131072]{0}', space=vmem, size = 0x20000, scoped, tag = 'output window, operand 0, single buffered']
    %10 = vsyncpa [#allocation3], 0
    %11 = vsyncpa [#allocation4], 0
    // Predicated region
    $region2: #{channel_cbam_apply.1} parent=1 // pred_check
      _
    $region3: #{channel_cbam_apply.1} parent=1 // pred_check_branch
      %13 = sbr.rel (0) target = $region5
    $region4: #{channel_cbam_apply.1} parent=1 // pred_region
      %s15 = ssub.s32 4096, 4096
      %16 = vsyncadd [#allocation3], %s15
      %s17 = sshll.u32 [#allocation2], 4
      %s18 = int_to_ptr.vmem [resolvable:$true] %s17
      %23 = dma.hbm_to_vmem [thread:$0]  %s0, 4096, %s18, [#allocation3], 128, 128, 8
    $region5: #{channel_cbam_apply.1} parent=1 // pred_fallthru
      _
    // Predicated region
    $region6: #{channel_cbam_apply.1} parent=1 // pred_check
      _
    $region7: #{channel_cbam_apply.1} parent=1 // pred_check_branch
      %25 = sbr.rel (0) target = $region9
    $region8: #{channel_cbam_apply.1} parent=1 // pred_region
      _
    $region9: #{channel_cbam_apply.1} parent=1 // pred_fallthru
      _
    // Predicated region
    $region10: #{channel_cbam_apply.1} parent=1 // pred_check
      _
    $region11: #{channel_cbam_apply.1} parent=1 // pred_check_branch
      %27 = sbr.rel (0) target = $region13
    $region12: #{channel_cbam_apply.1} parent=1 // pred_region
      _
    $region13: #{channel_cbam_apply.1} parent=1 // pred_fallthru
      _
    // Predicated region
    $region14: #{channel_cbam_apply.1} parent=1 // pred_check
      _
    $region15: #{channel_cbam_apply.1} parent=1 // pred_check_branch
      %29 = sbr.rel (0) target = $region17
    $region16: #{channel_cbam_apply.1} parent=1 // pred_region
      _
    $region17: #{channel_cbam_apply.1} parent=1 // pred_fallthru
      _
    // Predicated region
    $region18: #{channel_cbam_apply.1} parent=1 // pred_check
      _
    $region19: #{channel_cbam_apply.1} parent=1 // pred_check_branch
      %31 = sbr.rel (0) target = $region21
    $region20: #{channel_cbam_apply.1} parent=1 // pred_region
      _
    $region21: #{channel_cbam_apply.1} parent=1 // pred_fallthru
      _
    // Predicated region
    $region22: #{channel_cbam_apply.1} parent=1 // pred_check
      _
    $region23: #{channel_cbam_apply.1} parent=1 // pred_check_branch
      %33 = sbr.rel (0) target = $region25
    $region24: #{channel_cbam_apply.1} parent=1 // pred_region
      %34 = dma.done [#allocation3], 4096
    $region25: #{channel_cbam_apply.1} parent=1 // pred_fallthru
      _
    %v35 = vld [vmem:[#allocation2] sm:$0xff]
    %v36 = vld [vmem:[#allocation2 + $0x8] sm:$0xff]
    %v37 = vld [vmem:[#allocation2 + $0x10] sm:$0xff]
    %v38 = vld [vmem:[#allocation2 + $0x18] sm:$0xff]
    %v39 = vld [vmem:[#allocation2 + $0x20] sm:$0xff]
    %v40 = vld [vmem:[#allocation2 + $0x28] sm:$0xff]
    %v41 = vld [vmem:[#allocation2 + $0x30] sm:$0xff]
    %v42 = vld [vmem:[#allocation2 + $0x38] sm:$0xff]
    %v43 = vld [vmem:[#allocation2 + $0x40] sm:$0xff]
    %v44 = vld [vmem:[#allocation2 + $0x48] sm:$0xff]
    %v45 = vld [vmem:[#allocation2 + $0x50] sm:$0xff]
    %v46 = vld [vmem:[#allocation2 + $0x58] sm:$0xff]
    %v47 = vld [vmem:[#allocation2 + $0x60] sm:$0xff]
    %v48 = vld [vmem:[#allocation2 + $0x68] sm:$0xff]
    %v49 = vld [vmem:[#allocation2 + $0x70] sm:$0xff]
    %v50 = vld [vmem:[#allocation2 + $0x78] sm:$0xff]
    %v51 = vld [vmem:[#allocation2 + $0x80] sm:$0xff]
    %v52 = vld [vmem:[#allocation2 + $0x88] sm:$0xff]
    %v53 = vld [vmem:[#allocation2 + $0x90] sm:$0xff]
    %v54 = vld [vmem:[#allocation2 + $0x98] sm:$0xff]
    %v55 = vld [vmem:[#allocation2 + $0xa0] sm:$0xff]
    %v56 = vld [vmem:[#allocation2 + $0xa8] sm:$0xff]
    %v57 = vld [vmem:[#allocation2 + $0xb0] sm:$0xff]
    %v58 = vld [vmem:[#allocation2 + $0xb8] sm:$0xff]
    %v59 = vld [vmem:[#allocation2 + $0xc0] sm:$0xff]
    %v60 = vld [vmem:[#allocation2 + $0xc8] sm:$0xff]
    %v61 = vld [vmem:[#allocation2 + $0xd0] sm:$0xff]
    %v62 = vld [vmem:[#allocation2 + $0xd8] sm:$0xff]
    %v63 = vld [vmem:[#allocation2 + $0xe0] sm:$0xff]
    %v64 = vld [vmem:[#allocation2 + $0xe8] sm:$0xff]
    %v65 = vld [vmem:[#allocation2 + $0xf0] sm:$0xff]
    %v66 = vld [vmem:[#allocation2 + $0xf8] sm:$0xff]
    %67 = vadd.xlane.f32.xlu0 %v35
    %v68 = vpop.xlane.xlu0 %67
    %69 = vadd.xlane.f32.xlu0 %v36
    %v70 = vpop.xlane.xlu0 %69
    %71 = vadd.xlane.f32.xlu0 %v37
    %v72 = vpop.xlane.xlu0 %71
    %73 = vadd.xlane.f32.xlu0 %v38
    %v74 = vpop.xlane.xlu0 %73
    %75 = vadd.xlane.f32.xlu0 %v39
    %v76 = vpop.xlane.xlu0 %75
    %77 = vadd.xlane.f32.xlu0 %v40
    %v78 = vpop.xlane.xlu0 %77
    %79 = vadd.xlane.f32.xlu0 %v41
    %v80 = vpop.xlane.xlu0 %79
    %81 = vadd.xlane.f32.xlu0 %v42
    %v82 = vpop.xlane.xlu0 %81
    %83 = vadd.xlane.f32.xlu0 %v43
    %v84 = vpop.xlane.xlu0 %83
    %85 = vadd.xlane.f32.xlu0 %v44
    %v86 = vpop.xlane.xlu0 %85
    %87 = vadd.xlane.f32.xlu0 %v45
    %v88 = vpop.xlane.xlu0 %87
    %89 = vadd.xlane.f32.xlu0 %v46
    %v90 = vpop.xlane.xlu0 %89
    %91 = vadd.xlane.f32.xlu0 %v47
    %v92 = vpop.xlane.xlu0 %91
    %93 = vadd.xlane.f32.xlu0 %v48
    %v94 = vpop.xlane.xlu0 %93
    %95 = vadd.xlane.f32.xlu0 %v49
    %v96 = vpop.xlane.xlu0 %95
    %97 = vadd.xlane.f32.xlu0 %v50
    %v98 = vpop.xlane.xlu0 %97
    %99 = vadd.xlane.f32.xlu0 %v51
    %v100 = vpop.xlane.xlu0 %99
    %101 = vadd.xlane.f32.xlu0 %v52
    %v102 = vpop.xlane.xlu0 %101
    %103 = vadd.xlane.f32.xlu0 %v53
    %v104 = vpop.xlane.xlu0 %103
    %105 = vadd.xlane.f32.xlu0 %v54
    %v106 = vpop.xlane.xlu0 %105
    %107 = vadd.xlane.f32.xlu0 %v55
    %v108 = vpop.xlane.xlu0 %107
    %109 = vadd.xlane.f32.xlu0 %v56
    %v110 = vpop.xlane.xlu0 %109
    %111 = vadd.xlane.f32.xlu0 %v57
    %v112 = vpop.xlane.xlu0 %111
    %113 = vadd.xlane.f32.xlu0 %v58
    %v114 = vpop.xlane.xlu0 %113
    %115 = vadd.xlane.f32.xlu0 %v59
    %v116 = vpop.xlane.xlu0 %115
    %117 = vadd.xlane.f32.xlu0 %v60
    %v118 = vpop.xlane.xlu0 %117
    %119 = vadd.xlane.f32.xlu0 %v61
    %v120 = vpop.xlane.xlu0 %119
    %121 = vadd.xlane.f32.xlu0 %v62
    %v122 = vpop.xlane.xlu0 %121
    %123 = vadd.xlane.f32.xlu0 %v63
    %v124 = vpop.xlane.xlu0 %123
    %125 = vadd.xlane.f32.xlu0 %v64
    %v126 = vpop.xlane.xlu0 %125
    %127 = vadd.xlane.f32.xlu0 %v65
    %v128 = vpop.xlane.xlu0 %127
    %129 = vadd.xlane.f32.xlu0 %v66
    %v130 = vpop.xlane.xlu0 %129
    %v131 = vmul.f32 %v68, 0.0078125
    %v132 = vmul.f32 %v70, 0.0078125
    %v133 = vmul.f32 %v72, 0.0078125
    %v134 = vmul.f32 %v74, 0.0078125
    %v135 = vmul.f32 %v76, 0.0078125
    %v136 = vmul.f32 %v78, 0.0078125
    %v137 = vmul.f32 %v80, 0.0078125
    %v138 = vmul.f32 %v82, 0.0078125
    %v139 = vmul.f32 %v84, 0.0078125
    %v140 = vmul.f32 %v86, 0.0078125
    %v141 = vmul.f32 %v88, 0.0078125
    %v142 = vmul.f32 %v90, 0.0078125
    %v143 = vmul.f32 %v92, 0.0078125
    %v144 = vmul.f32 %v94, 0.0078125
    %v145 = vmul.f32 %v96, 0.0078125
    %v146 = vmul.f32 %v98, 0.0078125
    %v147 = vmul.f32 %v100, 0.0078125
    %v148 = vmul.f32 %v102, 0.0078125
    %v149 = vmul.f32 %v104, 0.0078125
    %v150 = vmul.f32 %v106, 0.0078125
    %v151 = vmul.f32 %v108, 0.0078125
    %v152 = vmul.f32 %v110, 0.0078125
    %v153 = vmul.f32 %v112, 0.0078125
    %v154 = vmul.f32 %v114, 0.0078125
    %v155 = vmul.f32 %v116, 0.0078125
    %v156 = vmul.f32 %v118, 0.0078125
    %v157 = vmul.f32 %v120, 0.0078125
    %v158 = vmul.f32 %v122, 0.0078125
    %v159 = vmul.f32 %v124, 0.0078125
    %v160 = vmul.f32 %v126, 0.0078125
    %v161 = vmul.f32 %v128, 0.0078125
    %v162 = vmul.f32 %v130, 0.0078125
    %163 = vmax.xlane.f32.xlu0 %v35
    %v164 = vpop.xlane.xlu0 %163
    %165 = vmax.xlane.f32.xlu0 %v36
    %v166 = vpop.xlane.xlu0 %165
    %167 = vmax.xlane.f32.xlu0 %v37
    %v168 = vpop.xlane.xlu0 %167
    %169 = vmax.xlane.f32.xlu0 %v38
    %v170 = vpop.xlane.xlu0 %169
    %171 = vmax.xlane.f32.xlu0 %v39
    %v172 = vpop.xlane.xlu0 %171
    %173 = vmax.xlane.f32.xlu0 %v40
    %v174 = vpop.xlane.xlu0 %173
    %175 = vmax.xlane.f32.xlu0 %v41
    %v176 = vpop.xlane.xlu0 %175
    %177 = vmax.xlane.f32.xlu0 %v42
    %v178 = vpop.xlane.xlu0 %177
    %179 = vmax.xlane.f32.xlu0 %v43
    %v180 = vpop.xlane.xlu0 %179
    %181 = vmax.xlane.f32.xlu0 %v44
    %v182 = vpop.xlane.xlu0 %181
    %183 = vmax.xlane.f32.xlu0 %v45
    %v184 = vpop.xlane.xlu0 %183
    %185 = vmax.xlane.f32.xlu0 %v46
    %v186 = vpop.xlane.xlu0 %185
    %187 = vmax.xlane.f32.xlu0 %v47
    %v188 = vpop.xlane.xlu0 %187
    %189 = vmax.xlane.f32.xlu0 %v48
    %v190 = vpop.xlane.xlu0 %189
    %191 = vmax.xlane.f32.xlu0 %v49
    %v192 = vpop.xlane.xlu0 %191
    %193 = vmax.xlane.f32.xlu0 %v50
    %v194 = vpop.xlane.xlu0 %193
    %195 = vmax.xlane.f32.xlu0 %v51
    %v196 = vpop.xlane.xlu0 %195
    %197 = vmax.xlane.f32.xlu0 %v52
    %v198 = vpop.xlane.xlu0 %197
    %199 = vmax.xlane.f32.xlu0 %v53
    %v200 = vpop.xlane.xlu0 %199
    %201 = vmax.xlane.f32.xlu0 %v54
    %v202 = vpop.xlane.xlu0 %201
    %203 = vmax.xlane.f32.xlu0 %v55
    %v204 = vpop.xlane.xlu0 %203
    %205 = vmax.xlane.f32.xlu0 %v56
    %v206 = vpop.xlane.xlu0 %205
    %207 = vmax.xlane.f32.xlu0 %v57
    %v208 = vpop.xlane.xlu0 %207
    %209 = vmax.xlane.f32.xlu0 %v58
    %v210 = vpop.xlane.xlu0 %209
    %211 = vmax.xlane.f32.xlu0 %v59
    %v212 = vpop.xlane.xlu0 %211
    %213 = vmax.xlane.f32.xlu0 %v60
    %v214 = vpop.xlane.xlu0 %213
    %215 = vmax.xlane.f32.xlu0 %v61
    %v216 = vpop.xlane.xlu0 %215
    %217 = vmax.xlane.f32.xlu0 %v62
    %v218 = vpop.xlane.xlu0 %217
    %219 = vmax.xlane.f32.xlu0 %v63
    %v220 = vpop.xlane.xlu0 %219
    %221 = vmax.xlane.f32.xlu0 %v64
    %v222 = vpop.xlane.xlu0 %221
    %223 = vmax.xlane.f32.xlu0 %v65
    %v224 = vpop.xlane.xlu0 %223
    %225 = vmax.xlane.f32.xlu0 %v66
    %v226 = vpop.xlane.xlu0 %225
    %v227 = vld [vmem:[%s1] sm:$0xff]
    %v228 = vld [vmem:[%s1 + $0x8] sm:$0xff]
    %v229 = vld [vmem:[%s1 + $0x10] sm:$0xff]
    %v230 = vld [vmem:[%s1 + $0x18] sm:$0xff]
    %v231 = vld [vmem:[%s2] sm:$0x1]
    %v233 = vlaneseq
    %v234 = vshrl.u32 %v233, 7
    %v235 = vsub.s32 0, %v234
    %v236 = vrot.slane %v231, %v235
    %v270 = vlaneseq
    %v271 = vand.u32 %v270, 127
    %v272 = vlaneseq
    %v273 = vshrl.u32 %v272, 7
    %v274 = vsub.s32 %v271, %v273
    %v275 = vrot.slane %v131, %v274
    %v276 = vadd.s32 %v271, 4294967288
    %v277 = vlaneseq
    %v278 = vshrl.u32 %v277, 7
    %v279 = vsub.s32 %v276, %v278
    %v280 = vrot.slane %v132, %v279
    %vm281 = vcmask 130112
    %v282 = vsel %vm281, %v280, %v275
    %v283 = vadd.s32 %v271, 4294967280
    %v284 = vlaneseq
    %v285 = vshrl.u32 %v284, 7
    %v286 = vsub.s32 %v283, %v285
    %v287 = vrot.slane %v133, %v286
    %vm288 = vcmask 195712
    %v289 = vsel %vm288, %v287, %v282
    %v290 = vadd.s32 %v271, 4294967272
    %v291 = vlaneseq
    %v292 = vshrl.u32 %v291, 7
    %v293 = vsub.s32 %v290, %v292
    %v294 = vrot.slane %v134, %v293
    %vm295 = vcmask 261312
    %v296 = vsel %vm295, %v294, %v289
    %v297 = vlaneseq
    %v298 = vshrl.u32 %v297, 7
    %v299 = vsub.s32 %v271, %v298
    %v300 = vrot.slane %v135, %v299
    %v301 = vlaneseq
    %v302 = vshrl.u32 %v301, 7
    %v303 = vsub.s32 %v276, %v302
    %v304 = vrot.slane %v136, %v303
    %v305 = vsel %vm281, %v304, %v300
    %v306 = vlaneseq
    %v307 = vshrl.u32 %v306, 7
    %v308 = vsub.s32 %v283, %v307
    %v309 = vrot.slane %v137, %v308
    %v310 = vsel %vm288, %v309, %v305
    %v311 = vlaneseq
    %v312 = vshrl.u32 %v311, 7
    %v313 = vsub.s32 %v290, %v312
    %v314 = vrot.slane %v138, %v313
    %v315 = vsel %vm295, %v314, %v310
    %v316 = vlaneseq
    %v317 = vshrl.u32 %v316, 7
    %v318 = vsub.s32 %v271, %v317
    %v319 = vrot.slane %v139, %v318
    %v320 = vlaneseq
    %v321 = vshrl.u32 %v320, 7
    %v322 = vsub.s32 %v276, %v321
    %v323 = vrot.slane %v140, %v322
    %v324 = vsel %vm281, %v323, %v319
    %v325 = vlaneseq
    %v326 = vshrl.u32 %v325, 7
    %v327 = vsub.s32 %v283, %v326
    %v328 = vrot.slane %v141, %v327
    %v329 = vsel %vm288, %v328, %v324
    %v330 = vlaneseq
    %v331 = vshrl.u32 %v330, 7
    %v332 = vsub.s32 %v290, %v331
    %v333 = vrot.slane %v142, %v332
    %v334 = vsel %vm295, %v333, %v329
    %v335 = vlaneseq
    %v336 = vshrl.u32 %v335, 7
    %v337 = vsub.s32 %v271, %v336
    %v338 = vrot.slane %v143, %v337
    %v339 = vlaneseq
    %v340 = vshrl.u32 %v339, 7
    %v341 = vsub.s32 %v276, %v340
    %v342 = vrot.slane %v144, %v341
    %v343 = vsel %vm281, %v342, %v338
    %v344 = vlaneseq
    %v345 = vshrl.u32 %v344, 7
    %v346 = vsub.s32 %v283, %v345
    %v347 = vrot.slane %v145, %v346
    %v348 = vsel %vm288, %v347, %v343
    %v349 = vlaneseq
    %v350 = vshrl.u32 %v349, 7
    %v351 = vsub.s32 %v290, %v350
    %v352 = vrot.slane %v146, %v351
    %v353 = vsel %vm295, %v352, %v348
    %v354 = vlaneseq
    %v355 = vshrl.u32 %v354, 7
    %v356 = vsub.s32 %v271, %v355
    %v357 = vrot.slane %v147, %v356
    %v358 = vlaneseq
    %v359 = vshrl.u32 %v358, 7
    %v360 = vsub.s32 %v276, %v359
    %v361 = vrot.slane %v148, %v360
    %v362 = vsel %vm281, %v361, %v357
    %v363 = vlaneseq
    %v364 = vshrl.u32 %v363, 7
    %v365 = vsub.s32 %v283, %v364
    %v366 = vrot.slane %v149, %v365
    %v367 = vsel %vm288, %v366, %v362
    %v368 = vlaneseq
    %v369 = vshrl.u32 %v368, 7
    %v370 = vsub.s32 %v290, %v369
    %v371 = vrot.slane %v150, %v370
    %v372 = vsel %vm295, %v371, %v367
    %v373 = vlaneseq
    %v374 = vshrl.u32 %v373, 7
    %v375 = vsub.s32 %v271, %v374
    %v376 = vrot.slane %v151, %v375
    %v377 = vlaneseq
    %v378 = vshrl.u32 %v377, 7
    %v379 = vsub.s32 %v276, %v378
    %v380 = vrot.slane %v152, %v379
    %v381 = vsel %vm281, %v380, %v376
    %v382 = vlaneseq
    %v383 = vshrl.u32 %v382, 7
    %v384 = vsub.s32 %v283, %v383
    %v385 = vrot.slane %v153, %v384
    %v386 = vsel %vm288, %v385, %v381
    %v387 = vlaneseq
    %v388 = vshrl.u32 %v387, 7
    %v389 = vsub.s32 %v290, %v388
    %v390 = vrot.slane %v154, %v389
    %v391 = vsel %vm295, %v390, %v386
    %v392 = vlaneseq
    %v393 = vshrl.u32 %v392, 7
    %v394 = vsub.s32 %v271, %v393
    %v395 = vrot.slane %v155, %v394
    %v396 = vlaneseq
    %v397 = vshrl.u32 %v396, 7
    %v398 = vsub.s32 %v276, %v397
    %v399 = vrot.slane %v156, %v398
    %v400 = vsel %vm281, %v399, %v395
    %v401 = vlaneseq
    %v402 = vshrl.u32 %v401, 7
    %v403 = vsub.s32 %v283, %v402
    %v404 = vrot.slane %v157, %v403
    %v405 = vsel %vm288, %v404, %v400
    %v406 = vlaneseq
    %v407 = vshrl.u32 %v406, 7
    %v408 = vsub.s32 %v290, %v407
    %v409 = vrot.slane %v158, %v408
    %v410 = vsel %vm295, %v409, %v405
    %v411 = vlaneseq
    %v412 = vshrl.u32 %v411, 7
    %v413 = vsub.s32 %v271, %v412
    %v414 = vrot.slane %v159, %v413
    %v415 = vlaneseq
    %v416 = vshrl.u32 %v415, 7
    %v417 = vsub.s32 %v276, %v416
    %v418 = vrot.slane %v160, %v417
    %v419 = vsel %vm281, %v418, %v414
    %v420 = vlaneseq
    %v421 = vshrl.u32 %v420, 7
    %v422 = vsub.s32 %v283, %v421
    %v423 = vrot.slane %v161, %v422
    %v424 = vsel %vm288, %v423, %v419
    %v425 = vlaneseq
    %v426 = vshrl.u32 %v425, 7
    %v427 = vsub.s32 %v290, %v426
    %v428 = vrot.slane %v162, %v427
    %v429 = vsel %vm295, %v428, %v424
    %vm430 = vcmask 1041409
    %v431 = vsel %vm430, %v315, %v296
    %vm432 = vcmask 1042434
    %v433 = vsel %vm432, %v334, %v431
    %vm434 = vcmask 1043459
    %v435 = vsel %vm434, %v353, %v433
    %vm436 = vcmask 1044484
    %v437 = vsel %vm436, %v372, %v435
    %vm438 = vcmask 1045509
    %v439 = vsel %vm438, %v391, %v437
    %vm440 = vcmask 1046534
    %v441 = vsel %vm440, %v410, %v439
    %vm442 = vcmask 1047559
    %v443 = vsel %vm442, %v429, %v441
    %vm444 = vcmask 261120
    %v445 = vsel %vm444, %v443, 0
    %447 = vmatprep.subr.mxu0 0.0
    %448 = vmatpush1.msra.mxu0 %v227
    %449 = vmatprep.subr.mxu0 0.0
    %450 = vmatpush1.msra.mxu0 %v228
    %451 = vmatprep.subr.mxu0 0.0
    %452 = vmatpush1.msra.mxu0 %v229
    %453 = vmatprep.subr.mxu0 0.0
    %454 = vmatpush1.msra.mxu0 %v230
    %455 = vmatprep.subr.mxu0 0.0
    %456 = vmatpush1.msra.mxu0 0.0
    %457 = vmatprep.subr.mxu0 0.0
    %458 = vmatpush1.msra.mxu0 0.0
    %459 = vmatprep.subr.mxu0 0.0
    %460 = vmatpush1.msra.mxu0 0.0
    %461 = vmatprep.subr.mxu0 0.0
    %462 = vmatpush1.msra.mxu0 0.0
    %463 = vmatprep.subr.mxu0 0.0
    %464 = vmatpush1.msra.mxu0 0.0
    %465 = vmatprep.subr.mxu0 0.0
    %466 = vmatpush1.msra.mxu0 0.0
    %467 = vmatprep.subr.mxu0 0.0
    %468 = vmatpush1.msra.mxu0 0.0
    %469 = vmatprep.subr.mxu0 0.0
    %470 = vmatpush1.msra.mxu0 0.0
    %471 = vmatprep.subr.mxu0 0.0
    %472 = vmatpush1.msra.mxu0 0.0
    %473 = vmatprep.subr.mxu0 0.0
    %474 = vmatpush1.msra.mxu0 0.0
    %475 = vmatprep.subr.mxu0 0.0
    %476 = vmatpush1.msra.mxu0 0.0
    %477 = vmatprep.subr.mxu0 0.0
    %478 = vmatpush1.msra.mxu0 0.0
    %479 = vmatprep.subr.mxu0 0.0
    %480 = vmatpush1.msra.mxu0 0.0
    %481 = vmatprep.subr.mxu0 0.0
    %482 = vmatpush1.msra.mxu0 0.0
    %483 = vmatprep.subr.mxu0 0.0
    %484 = vmatpush1.msra.mxu0 0.0
    %485 = vmatprep.subr.mxu0 0.0
    %486 = vmatpush1.msra.mxu0 0.0
    %487 = vmatprep.subr.mxu0 0.0
    %488 = vmatpush1.msra.mxu0 0.0
    %489 = vmatprep.subr.mxu0 0.0
    %490 = vmatpush1.msra.mxu0 0.0
    %491 = vmatprep.subr.mxu0 0.0
    %492 = vmatpush1.msra.mxu0 0.0
    %493 = vmatprep.subr.mxu0 0.0
    %494 = vmatpush1.msra.mxu0 0.0
    %495 = vmatprep.subr.mxu0 0.0
    %496 = vmatpush1.msra.mxu0 0.0
    %497 = vmatprep.subr.mxu0 0.0
    %498 = vmatpush1.msra.mxu0 0.0
    %499 = vmatprep.subr.mxu0 0.0
    %500 = vmatpush1.msra.mxu0 0.0
    %501 = vmatprep.subr.mxu0 0.0
    %502 = vmatpush1.msra.mxu0 0.0
    %503 = vmatprep.subr.mxu0 0.0
    %504 = vmatpush1.msra.mxu0 0.0
    %505 = vmatprep.subr.mxu0 0.0
    %506 = vmatpush1.msra.mxu0 0.0
    %507 = vmatprep.subr.mxu0 0.0
    %508 = vmatpush1.msra.mxu0 0.0
    %509 = vmatprep.subr.mxu0 0.0
    %510 = vmatpush1.msra.mxu0 0.0
    %511 = vmatprep.mubr.f32.mxu0 0.0
    %512 = vmatmul.mubr.f32.gmra.mrb[0].mxu0 %v445
    %v513 = vpop.f32.mrb[0].mxu0
    %v514 = vadd.f32 %v236, %v513
    %v515 = vpop.f32.mrb[0].mxu0
    %516 = vdwg.mxu0
    %v517 = vmax.f32 %v514, 0.0
    %v550 = vlaneseq
    %v551 = vshrl.u32 %v550, 7
    %v552 = vsub.s32 %v271, %v551
    %v553 = vrot.slane %v164, %v552
    %v554 = vlaneseq
    %v555 = vshrl.u32 %v554, 7
    %v556 = vsub.s32 %v276, %v555
    %v557 = vrot.slane %v166, %v556
    %v558 = vsel %vm281, %v557, %v553
    %v559 = vlaneseq
    %v560 = vshrl.u32 %v559, 7
    %v561 = vsub.s32 %v283, %v560
    %v562 = vrot.slane %v168, %v561
    %v563 = vsel %vm288, %v562, %v558
    %v564 = vlaneseq
    %v565 = vshrl.u32 %v564, 7
    %v566 = vsub.s32 %v290, %v565
    %v567 = vrot.slane %v170, %v566
    %v568 = vsel %vm295, %v567, %v563
    %v569 = vlaneseq
    %v570 = vshrl.u32 %v569, 7
    %v571 = vsub.s32 %v271, %v570
    %v572 = vrot.slane %v172, %v571
    %v573 = vlaneseq
    %v574 = vshrl.u32 %v573, 7
    %v575 = vsub.s32 %v276, %v574
    %v576 = vrot.slane %v174, %v575
    %v577 = vsel %vm281, %v576, %v572
    %v578 = vlaneseq
    %v579 = vshrl.u32 %v578, 7
    %v580 = vsub.s32 %v283, %v579
    %v581 = vrot.slane %v176, %v580
    %v582 = vsel %vm288, %v581, %v577
    %v583 = vlaneseq
    %v584 = vshrl.u32 %v583, 7
    %v585 = vsub.s32 %v290, %v584
    %v586 = vrot.slane %v178, %v585
    %v587 = vsel %vm295, %v586, %v582
    %v588 = vlaneseq
    %v589 = vshrl.u32 %v588, 7
    %v590 = vsub.s32 %v271, %v589
    %v591 = vrot.slane %v180, %v590
    %v592 = vlaneseq
    %v593 = vshrl.u32 %v592, 7
    %v594 = vsub.s32 %v276, %v593
    %v595 = vrot.slane %v182, %v594
    %v596 = vsel %vm281, %v595, %v591
    %v597 = vlaneseq
    %v598 = vshrl.u32 %v597, 7
    %v599 = vsub.s32 %v283, %v598
    %v600 = vrot.slane %v184, %v599
    %v601 = vsel %vm288, %v600, %v596
    %v602 = vlaneseq
    %v603 = vshrl.u32 %v602, 7
    %v604 = vsub.s32 %v290, %v603
    %v605 = vrot.slane %v186, %v604
    %v606 = vsel %vm295, %v605, %v601
    %v607 = vlaneseq
    %v608 = vshrl.u32 %v607, 7
    %v609 = vsub.s32 %v271, %v608
    %v610 = vrot.slane %v188, %v609
    %v611 = vlaneseq
    %v612 = vshrl.u32 %v611, 7
    %v613 = vsub.s32 %v276, %v612
    %v614 = vrot.slane %v190, %v613
    %v615 = vsel %vm281, %v614, %v610
    %v616 = vlaneseq
    %v617 = vshrl.u32 %v616, 7
    %v618 = vsub.s32 %v283, %v617
    %v619 = vrot.slane %v192, %v618
    %v620 = vsel %vm288, %v619, %v615
    %v621 = vlaneseq
    %v622 = vshrl.u32 %v621, 7
    %v623 = vsub.s32 %v290, %v622
    %v624 = vrot.slane %v194, %v623
    %v625 = vsel %vm295, %v624, %v620
    %v626 = vlaneseq
    %v627 = vshrl.u32 %v626, 7
    %v628 = vsub.s32 %v271, %v627
    %v629 = vrot.slane %v196, %v628
    %v630 = vlaneseq
    %v631 = vshrl.u32 %v630, 7
    %v632 = vsub.s32 %v276, %v631
    %v633 = vrot.slane %v198, %v632
    %v634 = vsel %vm281, %v633, %v629
    %v635 = vlaneseq
    %v636 = vshrl.u32 %v635, 7
    %v637 = vsub.s32 %v283, %v636
    %v638 = vrot.slane %v200, %v637
    %v639 = vsel %vm288, %v638, %v634
    %v640 = vlaneseq
    %v641 = vshrl.u32 %v640, 7
    %v642 = vsub.s32 %v290, %v641
    %v643 = vrot.slane %v202, %v642
    %v644 = vsel %vm295, %v643, %v639
    %v645 = vlaneseq
    %v646 = vshrl.u32 %v645, 7
    %v647 = vsub.s32 %v271, %v646
    %v648 = vrot.slane %v204, %v647
    %v649 = vlaneseq
    %v650 = vshrl.u32 %v649, 7
    %v651 = vsub.s32 %v276, %v650
    %v652 = vrot.slane %v206, %v651
    %v653 = vsel %vm281, %v652, %v648
    %v654 = vlaneseq
    %v655 = vshrl.u32 %v654, 7
    %v656 = vsub.s32 %v283, %v655
    %v657 = vrot.slane %v208, %v656
    %v658 = vsel %vm288, %v657, %v653
    %v659 = vlaneseq
    %v660 = vshrl.u32 %v659, 7
    %v661 = vsub.s32 %v290, %v660
    %v662 = vrot.slane %v210, %v661
    %v663 = vsel %vm295, %v662, %v658
    %v664 = vlaneseq
    %v665 = vshrl.u32 %v664, 7
    %v666 = vsub.s32 %v271, %v665
    %v667 = vrot.slane %v212, %v666
    %v668 = vlaneseq
    %v669 = vshrl.u32 %v668, 7
    %v670 = vsub.s32 %v276, %v669
    %v671 = vrot.slane %v214, %v670
    %v672 = vsel %vm281, %v671, %v667
    %v673 = vlaneseq
    %v674 = vshrl.u32 %v673, 7
    %v675 = vsub.s32 %v283, %v674
    %v676 = vrot.slane %v216, %v675
    %v677 = vsel %vm288, %v676, %v672
    %v678 = vlaneseq
    %v679 = vshrl.u32 %v678, 7
    %v680 = vsub.s32 %v290, %v679
    %v681 = vrot.slane %v218, %v680
    %v682 = vsel %vm295, %v681, %v677
    %v683 = vlaneseq
    %v684 = vshrl.u32 %v683, 7
    %v685 = vsub.s32 %v271, %v684
    %v686 = vrot.slane %v220, %v685
    %v687 = vlaneseq
    %v688 = vshrl.u32 %v687, 7
    %v689 = vsub.s32 %v276, %v688
    %v690 = vrot.slane %v222, %v689
    %v691 = vsel %vm281, %v690, %v686
    %v692 = vlaneseq
    %v693 = vshrl.u32 %v692, 7
    %v694 = vsub.s32 %v283, %v693
    %v695 = vrot.slane %v224, %v694
    %v696 = vsel %vm288, %v695, %v691
    %v697 = vlaneseq
    %v698 = vshrl.u32 %v697, 7
    %v699 = vsub.s32 %v290, %v698
    %v700 = vrot.slane %v226, %v699
    %v701 = vsel %vm295, %v700, %v696
    %v702 = vsel %vm430, %v587, %v568
    %v703 = vsel %vm432, %v606, %v702
    %v704 = vsel %vm434, %v625, %v703
    %v705 = vsel %vm436, %v644, %v704
    %v706 = vsel %vm438, %v663, %v705
    %v707 = vsel %vm440, %v682, %v706
    %v708 = vsel %vm442, %v701, %v707
    %v709 = vsel %vm444, %v708, 0
    %711 = vmatprep.subr.mxu0 0.0
    %712 = vmatpush1.msra.mxu0 %v227
    %713 = vmatprep.subr.mxu0 0.0
    %714 = vmatpush1.msra.mxu0 %v228
    %715 = vmatprep.subr.mxu0 0.0
    %716 = vmatpush1.msra.mxu0 %v229
    %717 = vmatprep.subr.mxu0 0.0
    %718 = vmatpush1.msra.mxu0 %v230
    %719 = vmatprep.subr.mxu0 0.0
    %720 = vmatpush1.msra.mxu0 0.0
    %721 = vmatprep.subr.mxu0 0.0
    %722 = vmatpush1.msra.mxu0 0.0
    %723 = vmatprep.subr.mxu0 0.0
    %724 = vmatpush1.msra.mxu0 0.0
    %725 = vmatprep.subr.mxu0 0.0
    %726 = vmatpush1.msra.mxu0 0.0
    %727 = vmatprep.subr.mxu0 0.0
    %728 = vmatpush1.msra.mxu0 0.0
    %729 = vmatprep.subr.mxu0 0.0
    %730 = vmatpush1.msra.mxu0 0.0
    %731 = vmatprep.subr.mxu0 0.0
    %732 = vmatpush1.msra.mxu0 0.0
    %733 = vmatprep.subr.mxu0 0.0
    %734 = vmatpush1.msra.mxu0 0.0
    %735 = vmatprep.subr.mxu0 0.0
    %736 = vmatpush1.msra.mxu0 0.0
    %737 = vmatprep.subr.mxu0 0.0
    %738 = vmatpush1.msra.mxu0 0.0
    %739 = vmatprep.subr.mxu0 0.0
    %740 = vmatpush1.msra.mxu0 0.0
    %741 = vmatprep.subr.mxu0 0.0
    %742 = vmatpush1.msra.mxu0 0.0
    %743 = vmatprep.subr.mxu0 0.0
    %744 = vmatpush1.msra.mxu0 0.0
    %745 = vmatprep.subr.mxu0 0.0
    %746 = vmatpush1.msra.mxu0 0.0
    %747 = vmatprep.subr.mxu0 0.0
    %748 = vmatpush1.msra.mxu0 0.0
    %749 = vmatprep.subr.mxu0 0.0
    %750 = vmatpush1.msra.mxu0 0.0
    %751 = vmatprep.subr.mxu0 0.0
    %752 = vmatpush1.msra.mxu0 0.0
    %753 = vmatprep.subr.mxu0 0.0
    %754 = vmatpush1.msra.mxu0 0.0
    %755 = vmatprep.subr.mxu0 0.0
    %756 = vmatpush1.msra.mxu0 0.0
    %757 = vmatprep.subr.mxu0 0.0
    %758 = vmatpush1.msra.mxu0 0.0
    %759 = vmatprep.subr.mxu0 0.0
    %760 = vmatpush1.msra.mxu0 0.0
    %761 = vmatprep.subr.mxu0 0.0
    %762 = vmatpush1.msra.mxu0 0.0
    %763 = vmatprep.subr.mxu0 0.0
    %764 = vmatpush1.msra.mxu0 0.0
    %765 = vmatprep.subr.mxu0 0.0
    %766 = vmatpush1.msra.mxu0 0.0
    %767 = vmatprep.subr.mxu0 0.0
    %768 = vmatpush1.msra.mxu0 0.0
    %769 = vmatprep.subr.mxu0 0.0
    %770 = vmatpush1.msra.mxu0 0.0
    %771 = vmatprep.subr.mxu0 0.0
    %772 = vmatpush1.msra.mxu0 0.0
    %773 = vmatprep.subr.mxu0 0.0
    %774 = vmatpush1.msra.mxu0 0.0
    %775 = vmatprep.mubr.f32.mxu0 0.0
    %776 = vmatmul.mubr.f32.gmra.mrb[0].mxu0 %v709
    %v777 = vpop.f32.mrb[0].mxu0
    %v778 = vadd.f32 %v236, %v777
    %v779 = vpop.f32.mrb[0].mxu0
    %780 = vdwg.mxu0
    %v781 = vmax.f32 %v778, 0.0
    %v782 = vadd.f32 %v517, %v781
    %v783 = vld [vmem:[%s3] sm:$0xff]
    %v784 = vld [vmem:[%s3 + $0x8] sm:$0xff]
    %v785 = vld [vmem:[%s4] sm:$0x1]
    %v787 = vlaneseq
    %v788 = vshrl.u32 %v787, 7
    %v789 = vsub.s32 0, %v788
    %v790 = vrot.slane %v785, %v789
    %vm792 = vcmask 130048
    %v794 = vsel %vm792, %v782, 0
    %796 = vmatprep.subr.mxu0 0.0
    %797 = vmatpush1.msra.mxu0 %v783
    %798 = vmatprep.subr.mxu0 0.0
    %799 = vmatpush1.msra.mxu0 %v784
    %800 = vmatprep.subr.mxu0 0.0
    %801 = vmatpush1.msra.mxu0 0.0
    %802 = vmatprep.subr.mxu0 0.0
    %803 = vmatpush1.msra.mxu0 0.0
    %804 = vmatprep.subr.mxu0 0.0
    %805 = vmatpush1.msra.mxu0 0.0
    %806 = vmatprep.subr.mxu0 0.0
    %807 = vmatpush1.msra.mxu0 0.0
    %808 = vmatprep.subr.mxu0 0.0
    %809 = vmatpush1.msra.mxu0 0.0
    %810 = vmatprep.subr.mxu0 0.0
    %811 = vmatpush1.msra.mxu0 0.0
    %812 = vmatprep.subr.mxu0 0.0
    %813 = vmatpush1.msra.mxu0 0.0
    %814 = vmatprep.subr.mxu0 0.0
    %815 = vmatpush1.msra.mxu0 0.0
    %816 = vmatprep.subr.mxu0 0.0
    %817 = vmatpush1.msra.mxu0 0.0
    %818 = vmatprep.subr.mxu0 0.0
    %819 = vmatpush1.msra.mxu0 0.0
    %820 = vmatprep.subr.mxu0 0.0
    %821 = vmatpush1.msra.mxu0 0.0
    %822 = vmatprep.subr.mxu0 0.0
    %823 = vmatpush1.msra.mxu0 0.0
    %824 = vmatprep.subr.mxu0 0.0
    %825 = vmatpush1.msra.mxu0 0.0
    %826 = vmatprep.subr.mxu0 0.0
    %827 = vmatpush1.msra.mxu0 0.0
    %828 = vmatprep.subr.mxu0 0.0
    %829 = vmatpush1.msra.mxu0 0.0
    %830 = vmatprep.subr.mxu0 0.0
    %831 = vmatpush1.msra.mxu0 0.0
    %832 = vmatprep.subr.mxu0 0.0
    %833 = vmatpush1.msra.mxu0 0.0
    %834 = vmatprep.subr.mxu0 0.0
    %835 = vmatpush1.msra.mxu0 0.0
    %836 = vmatprep.subr.mxu0 0.0
    %837 = vmatpush1.msra.mxu0 0.0
    %838 = vmatprep.subr.mxu0 0.0
    %839 = vmatpush1.msra.mxu0 0.0
    %840 = vmatprep.subr.mxu0 0.0
    %841 = vmatpush1.msra.mxu0 0.0
    %842 = vmatprep.subr.mxu0 0.0
    %843 = vmatpush1.msra.mxu0 0.0
    %844 = vmatprep.subr.mxu0 0.0
    %845 = vmatpush1.msra.mxu0 0.0
    %846 = vmatprep.subr.mxu0 0.0
    %847 = vmatpush1.msra.mxu0 0.0
    %848 = vmatprep.subr.mxu0 0.0
    %849 = vmatpush1.msra.mxu0 0.0
    %850 = vmatprep.subr.mxu0 0.0
    %851 = vmatpush1.msra.mxu0 0.0
    %852 = vmatprep.subr.mxu0 0.0
    %853 = vmatpush1.msra.mxu0 0.0
    %854 = vmatprep.subr.mxu0 0.0
    %855 = vmatpush1.msra.mxu0 0.0
    %856 = vmatprep.subr.mxu0 0.0
    %857 = vmatpush1.msra.mxu0 0.0
    %858 = vmatprep.subr.mxu0 0.0
    %859 = vmatpush1.msra.mxu0 0.0
    %860 = vmatprep.mubr.f32.mxu0 0.0
    %861 = vmatmul.mubr.f32.gmra.mrb[0].mxu0 %v794
    %v862 = vpop.f32.mrb[0].mxu0
    %v863 = vadd.f32 %v790, %v862
    %v864 = vpop.f32.mrb[0].mxu0
    %865 = vdwg.mxu0
    %v866 = vxor.u32 %v863, 2147483648
    %v867 = vmul.f32 %v866, 1.442695
    %v868 = vpow.pop %v867
    %v869 = vadd.f32 %v868, 1.0
    %v870 = vrcp.pop %v869
    %v871 = vmul.f32 1.0, %v870
    %v872 = vlaneseq
    %v873 = vshrl.u32 %v872, 7
    %v874 = vsub.s32 0, %v873
    %v875 = vrot.slane %v871, %v874
    %877 = vbcast.lane.b32.xlu0 %v875, 256
    %v878 = vpop.permute.xlu0 %877
    %s880 = sor.u32 256, 8
    %881 = vbcast.lane.b32.xlu0 %v875, %s880
    %v882 = vpop.permute.xlu0 %881
    %s884 = sor.u32 256, 16
    %885 = vbcast.lane.b32.xlu0 %v875, %s884
    %v886 = vpop.permute.xlu0 %885
    %s888 = sor.u32 256, 24
    %889 = vbcast.lane.b32.xlu0 %v875, %s888
    %v890 = vpop.permute.xlu0 %889
    %v891 = vlaneseq
    %v892 = vshrl.u32 %v891, 7
    %v893 = vsub.s32 1, %v892
    %v894 = vrot.slane %v871, %v893
    %896 = vbcast.lane.b32.xlu0 %v894, 256
    %v897 = vpop.permute.xlu0 %896
    %s899 = sor.u32 256, 8
    %900 = vbcast.lane.b32.xlu0 %v894, %s899
    %v901 = vpop.permute.xlu0 %900
    %s903 = sor.u32 256, 16
    %904 = vbcast.lane.b32.xlu0 %v894, %s903
    %v905 = vpop.permute.xlu0 %904
    %s907 = sor.u32 256, 24
    %908 = vbcast.lane.b32.xlu0 %v894, %s907
    %v909 = vpop.permute.xlu0 %908
    %v910 = vlaneseq
    %v911 = vshrl.u32 %v910, 7
    %v912 = vsub.s32 2, %v911
    %v913 = vrot.slane %v871, %v912
    %915 = vbcast.lane.b32.xlu0 %v913, 256
    %v916 = vpop.permute.xlu0 %915
    %s918 = sor.u32 256, 8
    %919 = vbcast.lane.b32.xlu0 %v913, %s918
    %v920 = vpop.permute.xlu0 %919
    %s922 = sor.u32 256, 16
    %923 = vbcast.lane.b32.xlu0 %v913, %s922
    %v924 = vpop.permute.xlu0 %923
    %s926 = sor.u32 256, 24
    %927 = vbcast.lane.b32.xlu0 %v913, %s926
    %v928 = vpop.permute.xlu0 %927
    %v929 = vlaneseq
    %v930 = vshrl.u32 %v929, 7
    %v931 = vsub.s32 3, %v930
    %v932 = vrot.slane %v871, %v931
    %934 = vbcast.lane.b32.xlu0 %v932, 256
    %v935 = vpop.permute.xlu0 %934
    %s937 = sor.u32 256, 8
    %938 = vbcast.lane.b32.xlu0 %v932, %s937
    %v939 = vpop.permute.xlu0 %938
    %s941 = sor.u32 256, 16
    %942 = vbcast.lane.b32.xlu0 %v932, %s941
    %v943 = vpop.permute.xlu0 %942
    %s945 = sor.u32 256, 24
    %946 = vbcast.lane.b32.xlu0 %v932, %s945
    %v947 = vpop.permute.xlu0 %946
    %v948 = vlaneseq
    %v949 = vshrl.u32 %v948, 7
    %v950 = vsub.s32 4, %v949
    %v951 = vrot.slane %v871, %v950
    %953 = vbcast.lane.b32.xlu0 %v951, 256
    %v954 = vpop.permute.xlu0 %953
    %s956 = sor.u32 256, 8
    %957 = vbcast.lane.b32.xlu0 %v951, %s956
    %v958 = vpop.permute.xlu0 %957
    %s960 = sor.u32 256, 16
    %961 = vbcast.lane.b32.xlu0 %v951, %s960
    %v962 = vpop.permute.xlu0 %961
    %s964 = sor.u32 256, 24
    %965 = vbcast.lane.b32.xlu0 %v951, %s964
    %v966 = vpop.permute.xlu0 %965
    %v967 = vlaneseq
    %v968 = vshrl.u32 %v967, 7
    %v969 = vsub.s32 5, %v968
    %v970 = vrot.slane %v871, %v969
    %972 = vbcast.lane.b32.xlu0 %v970, 256
    %v973 = vpop.permute.xlu0 %972
    %s975 = sor.u32 256, 8
    %976 = vbcast.lane.b32.xlu0 %v970, %s975
    %v977 = vpop.permute.xlu0 %976
    %s979 = sor.u32 256, 16
    %980 = vbcast.lane.b32.xlu0 %v970, %s979
    %v981 = vpop.permute.xlu0 %980
    %s983 = sor.u32 256, 24
    %984 = vbcast.lane.b32.xlu0 %v970, %s983
    %v985 = vpop.permute.xlu0 %984
    %v986 = vlaneseq
    %v987 = vshrl.u32 %v986, 7
    %v988 = vsub.s32 6, %v987
    %v989 = vrot.slane %v871, %v988
    %991 = vbcast.lane.b32.xlu0 %v989, 256
    %v992 = vpop.permute.xlu0 %991
    %s994 = sor.u32 256, 8
    %995 = vbcast.lane.b32.xlu0 %v989, %s994
    %v996 = vpop.permute.xlu0 %995
    %s998 = sor.u32 256, 16
    %999 = vbcast.lane.b32.xlu0 %v989, %s998
    %v1000 = vpop.permute.xlu0 %999
    %s1002 = sor.u32 256, 24
    %1003 = vbcast.lane.b32.xlu0 %v989, %s1002
    %v1004 = vpop.permute.xlu0 %1003
    %v1005 = vlaneseq
    %v1006 = vshrl.u32 %v1005, 7
    %v1007 = vsub.s32 7, %v1006
    %v1008 = vrot.slane %v871, %v1007
    %1010 = vbcast.lane.b32.xlu0 %v1008, 256
    %v1011 = vpop.permute.xlu0 %1010
    %s1013 = sor.u32 256, 8
    %1014 = vbcast.lane.b32.xlu0 %v1008, %s1013
    %v1015 = vpop.permute.xlu0 %1014
    %s1017 = sor.u32 256, 16
    %1018 = vbcast.lane.b32.xlu0 %v1008, %s1017
    %v1019 = vpop.permute.xlu0 %1018
    %s1021 = sor.u32 256, 24
    %1022 = vbcast.lane.b32.xlu0 %v1008, %s1021
    %v1023 = vpop.permute.xlu0 %1022
    %v1024 = vmul.f32 %v35, %v878
    %v1025 = vmul.f32 %v36, %v882
    %v1026 = vmul.f32 %v37, %v886
    %v1027 = vmul.f32 %v38, %v890
    %v1028 = vmul.f32 %v39, %v897
    %v1029 = vmul.f32 %v40, %v901
    %v1030 = vmul.f32 %v41, %v905
    %v1031 = vmul.f32 %v42, %v909
    %v1032 = vmul.f32 %v43, %v916
    %v1033 = vmul.f32 %v44, %v920
    %v1034 = vmul.f32 %v45, %v924
    %v1035 = vmul.f32 %v46, %v928
    %v1036 = vmul.f32 %v47, %v935
    %v1037 = vmul.f32 %v48, %v939
    %v1038 = vmul.f32 %v49, %v943
    %v1039 = vmul.f32 %v50, %v947
    %v1040 = vmul.f32 %v51, %v954
    %v1041 = vmul.f32 %v52, %v958
    %v1042 = vmul.f32 %v53, %v962
    %v1043 = vmul.f32 %v54, %v966
    %v1044 = vmul.f32 %v55, %v973
    %v1045 = vmul.f32 %v56, %v977
    %v1046 = vmul.f32 %v57, %v981
    %v1047 = vmul.f32 %v58, %v985
    %v1048 = vmul.f32 %v59, %v992
    %v1049 = vmul.f32 %v60, %v996
    %v1050 = vmul.f32 %v61, %v1000
    %v1051 = vmul.f32 %v62, %v1004
    %v1052 = vmul.f32 %v63, %v1011
    %v1053 = vmul.f32 %v64, %v1015
    %v1054 = vmul.f32 %v65, %v1019
    %v1055 = vmul.f32 %v66, %v1023
    %1056 = vst [vmem:[#allocation5] sm:$0xff] %v1024
    %1057 = vst [vmem:[#allocation5 + $0x8] sm:$0xff] %v1025
    %1058 = vst [vmem:[#allocation5 + $0x10] sm:$0xff] %v1026
    %1059 = vst [vmem:[#allocation5 + $0x18] sm:$0xff] %v1027
    %1060 = vst [vmem:[#allocation5 + $0x20] sm:$0xff] %v1028
    %1061 = vst [vmem:[#allocation5 + $0x28] sm:$0xff] %v1029
    %1062 = vst [vmem:[#allocation5 + $0x30] sm:$0xff] %v1030
    %1063 = vst [vmem:[#allocation5 + $0x38] sm:$0xff] %v1031
    %1064 = vst [vmem:[#allocation5 + $0x40] sm:$0xff] %v1032
    %1065 = vst [vmem:[#allocation5 + $0x48] sm:$0xff] %v1033
    %1066 = vst [vmem:[#allocation5 + $0x50] sm:$0xff] %v1034
    %1067 = vst [vmem:[#allocation5 + $0x58] sm:$0xff] %v1035
    %1068 = vst [vmem:[#allocation5 + $0x60] sm:$0xff] %v1036
    %1069 = vst [vmem:[#allocation5 + $0x68] sm:$0xff] %v1037
    %1070 = vst [vmem:[#allocation5 + $0x70] sm:$0xff] %v1038
    %1071 = vst [vmem:[#allocation5 + $0x78] sm:$0xff] %v1039
    %1072 = vst [vmem:[#allocation5 + $0x80] sm:$0xff] %v1040
    %1073 = vst [vmem:[#allocation5 + $0x88] sm:$0xff] %v1041
    %1074 = vst [vmem:[#allocation5 + $0x90] sm:$0xff] %v1042
    %1075 = vst [vmem:[#allocation5 + $0x98] sm:$0xff] %v1043
    %1076 = vst [vmem:[#allocation5 + $0xa0] sm:$0xff] %v1044
    %1077 = vst [vmem:[#allocation5 + $0xa8] sm:$0xff] %v1045
    %1078 = vst [vmem:[#allocation5 + $0xb0] sm:$0xff] %v1046
    %1079 = vst [vmem:[#allocation5 + $0xb8] sm:$0xff] %v1047
    %1080 = vst [vmem:[#allocation5 + $0xc0] sm:$0xff] %v1048
    %1081 = vst [vmem:[#allocation5 + $0xc8] sm:$0xff] %v1049
    %1082 = vst [vmem:[#allocation5 + $0xd0] sm:$0xff] %v1050
    %1083 = vst [vmem:[#allocation5 + $0xd8] sm:$0xff] %v1051
    %1084 = vst [vmem:[#allocation5 + $0xe0] sm:$0xff] %v1052
    %1085 = vst [vmem:[#allocation5 + $0xe8] sm:$0xff] %v1053
    %1086 = vst [vmem:[#allocation5 + $0xf0] sm:$0xff] %v1054
    %1087 = vst [vmem:[#allocation5 + $0xf8] sm:$0xff] %v1055
    // Predicated region
    $region26: #{channel_cbam_apply.1} parent=1 // pred_check
      _
    $region27: #{channel_cbam_apply.1} parent=1 // pred_check_branch
      %1089 = sbr.rel (0) target = $region29
    $region28: #{channel_cbam_apply.1} parent=1 // pred_region
      %s1091 = ssub.s32 4096, 4096
      %1092 = vsyncadd [#allocation4], %s1091
      %s1093 = sshll.u32 [#allocation5], 4
      %s1094 = int_to_ptr.vmem [resolvable:$true] %s1093
      %1099 = dma.vmem_to_hbm [thread:$0]  %s1094, 4096, %s5, [#allocation4], 128, 128, 8
    $region29: #{channel_cbam_apply.1} parent=1 // pred_fallthru
      _
    // Predicated region
    $region30: #{channel_cbam_apply.1} parent=1 // pred_check
      _
    $region31: #{channel_cbam_apply.1} parent=1 // pred_check_branch
      %1101 = sbr.rel (0) target = $region33
    $region32: #{channel_cbam_apply.1} parent=1 // pred_region
      %1102 = dma.done [#allocation4], 4096
    $region33: #{channel_cbam_apply.1} parent=1 // pred_fallthru
      _
    %1103 = vsyncpa [#allocation3], 1
    %1104 = vsyncpa [#allocation4], 1

</llo_original>
